<compile_context>
chip_gen: v7x
topology: tpu7x:2x2x1
jax: 0.10.0
libtpu: 0.0.40
codegen_flags: <defaults>
</compile_context>

<pallas_src>
import jax
import jax.numpy as jnp
from jax.experimental import pallas as pl
from jax.experimental.pallas import tpu as pltpu

DIM_FROM = 3
DIM_TO = 2


def mlp_kernel(xt_ref, w1_ref, b1_ref, w2_ref, b2_ref, ot_ref):
    # xt_ref: [DIM_FROM, TB]  (batch on lanes)
    # w1_ref: [H, DIM_FROM]   b1_ref: [H, 1]
    # w2_ref: [DIM_TO, H]     b2_ref: [DIM_TO, 1]
    # ot_ref: [DIM_TO, TB]
    xt = xt_ref[...]
    w1 = w1_ref[...]
    dim_from = xt.shape[0]

    # Layer 1 on the VPU: DIM_FROM broadcast FMAs over [H, TB]
    # (bias column lane-broadcast, x row sublane-broadcast).
    h = b1_ref[...] + w1[:, 0:1] * xt[0:1, :]
    for j in range(1, dim_from):
        h = h + w1[:, j:j + 1] * xt[j:j + 1, :]
    h = jnp.maximum(h, 0.0)

    # Layer 2 on the MXU: [DIM_TO, H] @ [H, TB] -> [DIM_TO, TB], full lane-width N.
    y = jnp.dot(w2_ref[...], h, preferred_element_type=jnp.float32) + b2_ref[...]
    ot_ref[...] = jnp.maximum(y, 0.0).astype(ot_ref.dtype)


def linear2_relu2(x, w1, b1, w2, b2, *, block_b=1024):
    """x: [B, DIM_FROM]; w1: [H, DIM_FROM]; b1: [H]; w2: [DIM_TO, H]; b2: [DIM_TO].

    Weights are in torch nn.Linear orientation ([out_features, in_features]).
    Returns [B, DIM_TO].
    """
    B, dim_from = x.shape
    H = w1.shape[0]
    dim_to = w2.shape[0]

    # Lane-dense batch tiles: pad B up to a multiple of 128, tile with TB rows.
    b_pad = max(128, -(-B // 128) * 128)
    tb = min(block_b, b_pad)
    assert tb % 128 == 0
    b_pad = -(-b_pad // tb) * tb
    if b_pad != B:
        x = jnp.pad(x, ((0, b_pad - B), (0, 0)))

    xt = x.T  # [DIM_FROM, b_pad]: 3 sublanes x batch lanes

    flops = 2 * b_pad * (dim_from * H + H * dim_to)
    bytes_accessed = 4 * (b_pad * (dim_from + dim_to)
                          + H * (dim_from + 1) + dim_to * (H + 1))

    yt = pl.pallas_call(
        mlp_kernel,
        out_shape=jax.ShapeDtypeStruct((dim_to, b_pad), x.dtype),
        grid=(b_pad // tb,),
        in_specs=[
            pl.BlockSpec((dim_from, tb), lambda i: (0, i)),   # streamed batch tiles
            pl.BlockSpec((H, dim_from), lambda i: (0, 0)),    # weights: DMA'd once,
            pl.BlockSpec((H, 1), lambda i: (0, 0)),           # resident across grid
            pl.BlockSpec((dim_to, H), lambda i: (0, 0)),
            pl.BlockSpec((dim_to, 1), lambda i: (0, 0)),
        ],
        out_specs=pl.BlockSpec((dim_to, tb), lambda i: (0, i)),
        compiler_params=pltpu.CompilerParams(
            dimension_semantics=("parallel",),                # shard batch across TCs
        ),
        cost_estimate=pl.CostEstimate(
            flops=flops, transcendentals=0, bytes_accessed=bytes_accessed),
    )(xt, w1, b1.reshape(H, 1), w2, b2.reshape(dim_to, 1))

    return yt[:, :B].T


def init_params(key, hidden):
    """Deterministic init mimicking nn.Linear's uniform(-1/sqrt(fan_in), 1/sqrt(fan_in)).

    Weights kept in torch orientation: [out_features, in_features].
    """
    k1, k2, k3, k4 = jax.random.split(key, 4)
    bound1 = 1.0 / jnp.sqrt(DIM_FROM)
    bound2 = 1.0 / jnp.sqrt(hidden)
    w1 = jax.random.uniform(k1, (hidden, DIM_FROM), jnp.float32, -bound1, bound1)
    b1 = jax.random.uniform(k2, (hidden,), jnp.float32, -bound1, bound1)
    w2 = jax.random.uniform(k3, (DIM_TO, hidden), jnp.float32, -bound2, bound2)
    b2 = jax.random.uniform(k4, (DIM_TO,), jnp.float32, -bound2, bound2)
    return w1, b1, w2, b2


if __name__ == "__main__":
    key = jax.random.PRNGKey(0)
    kx, kp = jax.random.split(key)

    batch = 8
    hidden = 32

    x = jax.random.normal(kx, (batch, DIM_FROM), jnp.float32)
    w1, b1, w2, b2 = init_params(kp, hidden)

    out = linear2_relu2(x, w1, b1, w2, b2)
    out = jax.block_until_ready(out)

    # Pure-JAX reference (torch-layout weights: y = x @ W^T + b)
    ref = jnp.maximum(jnp.maximum(x @ w1.T + b1, 0.0) @ w2.T + b2, 0.0)
    assert out.shape == (batch, DIM_TO)
    assert jnp.allclose(out, ref, atol=1e-5, rtol=1e-5)

    print("KERNEL_OK")
</pallas_src>

<mosaic_0001>
module attributes {stable_mosaic.version = 11 : i64} {
  func.func @mlp_kernel(%arg0: i32, %arg1: memref<3x128xf32, #tpu.memory_space<vmem>>, %arg2: memref<32x3xf32, #tpu.memory_space<vmem>>, %arg3: memref<32x1xf32, #tpu.memory_space<vmem>>, %arg4: memref<2x32xf32, #tpu.memory_space<vmem>>, %arg5: memref<2x1xf32, #tpu.memory_space<vmem>>, %arg6: memref<2x128xf32, #tpu.memory_space<vmem>>) attributes {dimension_semantics = [#tpu.dimension_semantics<parallel>], iteration_bounds = array<i64: 1>, scalar_prefetch = 0 : i64, scratch_operands = 0 : i64, tpu.core_type = #tpu.core_type<tc>, window_params = [{transform_indices = @transform_0, window_bounds = array<i64: 3, 128>}, {pipeline_mode = #tpu.pipeline_mode<synchronous>, transform_indices = @transform_1, window_bounds = array<i64: 32, 3>}, {pipeline_mode = #tpu.pipeline_mode<synchronous>, transform_indices = @transform_2, window_bounds = array<i64: 32, 1>}, {pipeline_mode = #tpu.pipeline_mode<synchronous>, transform_indices = @transform_3, window_bounds = array<i64: 2, 32>}, {pipeline_mode = #tpu.pipeline_mode<synchronous>, transform_indices = @transform_4, window_bounds = array<i64: 2, 1>}, {transform_indices = @transform_5, window_bounds = array<i64: 2, 128>}]} {
    %c0 = arith.constant 0 : index
    %c0_0 = arith.constant 0 : index
    %0 = vector.load %arg1[%c0, %c0_0] : memref<3x128xf32, #tpu.memory_space<vmem>>, vector<3x128xf32>
    %c0_1 = arith.constant 0 : index
    %c0_2 = arith.constant 0 : index
    %1 = vector.load %arg2[%c0_1, %c0_2] : memref<32x3xf32, #tpu.memory_space<vmem>>, vector<32x3xf32>
    %c0_3 = arith.constant 0 : index
    %c0_4 = arith.constant 0 : index
    %2 = vector.load %arg3[%c0_3, %c0_4] : memref<32x1xf32, #tpu.memory_space<vmem>>, vector<32x1xf32>
    %3 = vector.extract_strided_slice %1 {offsets = [0, 0], sizes = [32, 1], strides = [1, 1]} : vector<32x3xf32> to vector<32x1xf32>
    %4 = vector.extract_strided_slice %0 {offsets = [0, 0], sizes = [1, 128], strides = [1, 1]} : vector<3x128xf32> to vector<1x128xf32>
    %5 = vector.broadcast %3 : vector<32x1xf32> to vector<32x128xf32>
    %6 = vector.broadcast %4 : vector<1x128xf32> to vector<32x128xf32>
    %7 = arith.mulf %5, %6 : vector<32x128xf32>
    %8 = vector.broadcast %2 : vector<32x1xf32> to vector<32x128xf32>
    %9 = arith.addf %8, %7 : vector<32x128xf32>
    %10 = vector.extract_strided_slice %1 {offsets = [0, 1], sizes = [32, 1], strides = [1, 1]} : vector<32x3xf32> to vector<32x1xf32>
    %11 = vector.extract_strided_slice %0 {offsets = [1, 0], sizes = [1, 128], strides = [1, 1]} : vector<3x128xf32> to vector<1x128xf32>
    %12 = vector.broadcast %10 : vector<32x1xf32> to vector<32x128xf32>
    %13 = vector.broadcast %11 : vector<1x128xf32> to vector<32x128xf32>
    %14 = arith.mulf %12, %13 : vector<32x128xf32>
    %15 = arith.addf %9, %14 : vector<32x128xf32>
    %16 = vector.extract_strided_slice %1 {offsets = [0, 2], sizes = [32, 1], strides = [1, 1]} : vector<32x3xf32> to vector<32x1xf32>
    %17 = vector.extract_strided_slice %0 {offsets = [2, 0], sizes = [1, 128], strides = [1, 1]} : vector<3x128xf32> to vector<1x128xf32>
    %18 = vector.broadcast %16 : vector<32x1xf32> to vector<32x128xf32>
    %19 = vector.broadcast %17 : vector<1x128xf32> to vector<32x128xf32>
    %20 = arith.mulf %18, %19 : vector<32x128xf32>
    %21 = arith.addf %15, %20 : vector<32x128xf32>
    %cst = arith.constant 0.000000e+00 : f32
    %22 = vector.broadcast %cst : f32 to vector<32x128xf32>
    %23 = arith.maximumf %21, %22 : vector<32x128xf32>
    %c0_5 = arith.constant 0 : index
    %c0_6 = arith.constant 0 : index
    %24 = vector.load %arg4[%c0_5, %c0_6] : memref<2x32xf32, #tpu.memory_space<vmem>>, vector<2x32xf32>
    %cst_7 = arith.constant dense<0.000000e+00> : vector<2x128xf32>
    %25 = tpu.matmul %24, %23, %cst_7 {dimension_numbers = #tpu.dot_dimension_numbers<[1], [0], [0], [1], [0, 0, 1, 1], [], []>} : vector<2x32xf32>, vector<32x128xf32>, vector<2x128xf32> -> vector<2x128xf32>
    %c0_8 = arith.constant 0 : index
    %c0_9 = arith.constant 0 : index
    %26 = vector.load %arg5[%c0_8, %c0_9] : memref<2x1xf32, #tpu.memory_space<vmem>>, vector<2x1xf32>
    %27 = vector.broadcast %26 : vector<2x1xf32> to vector<2x128xf32>
    %28 = arith.addf %25, %27 : vector<2x128xf32>
    %cst_10 = arith.constant 0.000000e+00 : f32
    %29 = vector.broadcast %cst_10 : f32 to vector<2x128xf32>
    %30 = arith.maximumf %28, %29 : vector<2x128xf32>
    %c0_11 = arith.constant 0 : index
    %c0_12 = arith.constant 0 : index
    %31 = vector.load %arg6[%c0_11, %c0_12] : memref<2x128xf32, #tpu.memory_space<vmem>>, vector<2x128xf32>
    tpu.vector_store %arg6[%c0_11, %c0_12], %30 {strides = array<i32>} : memref<2x128xf32, #tpu.memory_space<vmem>>, vector<2x128xf32>,
    return
  }
  func.func @transform_0(%arg0: i32) -> (i32, i32) {
    %c0_i32 = arith.constant 0 : i32
    %c0_i32_0 = arith.constant 0 : i32
    return %c0_i32, %arg0 : i32, i32
  }
  func.func @transform_1(%arg0: i32) -> (i32, i32) {
    %c0_i32 = arith.constant 0 : i32
    %c0_i32_0 = arith.constant 0 : i32
    %c0_i32_1 = arith.constant 0 : i32
    return %c0_i32, %c0_i32_0 : i32, i32
  }
  func.func @transform_2(%arg0: i32) -> (i32, i32) {
    %c0_i32 = arith.constant 0 : i32
    %c0_i32_0 = arith.constant 0 : i32
    %c0_i32_1 = arith.constant 0 : i32
    return %c0_i32, %c0_i32_0 : i32, i32
  }
  func.func @transform_3(%arg0: i32) -> (i32, i32) {
    %c0_i32 = arith.constant 0 : i32
    %c0_i32_0 = arith.constant 0 : i32
    %c0_i32_1 = arith.constant 0 : i32
    return %c0_i32, %c0_i32_0 : i32, i32
  }
  func.func @transform_4(%arg0: i32) -> (i32, i32) {
    %c0_i32 = arith.constant 0 : i32
    %c0_i32_0 = arith.constant 0 : i32
    %c0_i32_1 = arith.constant 0 : i32
    return %c0_i32, %c0_i32_0 : i32, i32
  }
  func.func @transform_5(%arg0: i32) -> (i32, i32) {
    %c0_i32 = arith.constant 0 : i32
    %c0_i32_0 = arith.constant 0 : i32
    return %c0_i32, %arg0 : i32, i32
  }
}

</mosaic_0001>

<llo_original>
// kernel: tpu_custom_call.1
$region0: #{tpu_custom_call.1}
  #allocation0 [shape = 'u32[]', space=smem, size = 0x4, offset = 0x4, fixed_abs, tag = 'smem constant byte address 0x4 - core index']
  #allocation1 [shape = 'u32[144,128]{1,0:T(1,128)}', space=vmem, size = 0x12000, scoped, tag = 'internal scratch']
  %s0 = inlined_call_operand.vmem [shape: f32[3,128], index: 0, kind: input, shape index: {}]
  %s1 = inlined_call_operand.vmem [shape: f32[32,3], index: 1, kind: input, shape index: {}]
  %s2 = inlined_call_operand.vmem [shape: f32[32,1], index: 2, kind: input, shape index: {}]
  %s3 = inlined_call_operand.vmem [shape: f32[2,32], index: 3, kind: input, shape index: {}]
  %s4 = inlined_call_operand.vmem [shape: f32[2,1], index: 4, kind: input, shape index: {}]
  %s5 = inlined_call_operand.hbm [shape: f32[2,128], index: 5, kind: output, shape index: {}]
  %s6 = sld [smem:[#allocation0]]
  $region30: #{tpu_custom_call.1} parent=0
    _
  %s8 = ssub.s32 1, %s6
  %s9 = scalar_select 0, %s8, %s6
  $region1: #{tpu_custom_call.1} parent=0
    #allocation2 [shape = 'u8[1024]{0}', space=vmem, size = 0x400, scoped, tag = 'output window, operand 0, single buffered']
    #allocation3 [shape = 's32[1]{0}', space=sflag, size = 0x4, scoped, tag = 'scoped memory for tpu_custom_call.1']
    %10 = vsyncpa [#allocation3], 0
    // Predicated region
    $region2: #{tpu_custom_call.1} parent=1 // pred_check
      _
    $region3: #{tpu_custom_call.1} parent=1 // pred_check_branch
      %12 = sbr.rel (0) target = $region5
    $region4: #{tpu_custom_call.1} parent=1 // pred_region
      _
    $region5: #{tpu_custom_call.1} parent=1 // pred_fallthru
      _
    // Predicated region
    $region6: #{tpu_custom_call.1} parent=1 // pred_check
      _
    $region7: #{tpu_custom_call.1} parent=1 // pred_check_branch
      %14 = sbr.rel (0) target = $region9
    $region8: #{tpu_custom_call.1} parent=1 // pred_region
      _
    $region9: #{tpu_custom_call.1} parent=1 // pred_fallthru
      _
    // Predicated region
    $region10: #{tpu_custom_call.1} parent=1 // pred_check
      _
    $region11: #{tpu_custom_call.1} parent=1 // pred_check_branch
      %16 = sbr.rel (0) target = $region13
    $region12: #{tpu_custom_call.1} parent=1 // pred_region
      _
    $region13: #{tpu_custom_call.1} parent=1 // pred_fallthru
      _
    // Predicated region
    $region14: #{tpu_custom_call.1} parent=1 // pred_check
      _
    $region15: #{tpu_custom_call.1} parent=1 // pred_check_branch
      %18 = sbr.rel (0) target = $region17
    $region16: #{tpu_custom_call.1} parent=1 // pred_region
      _
    $region17: #{tpu_custom_call.1} parent=1 // pred_fallthru
      _
    // Predicated region
    $region18: #{tpu_custom_call.1} parent=1 // pred_check
      _
    $region19: #{tpu_custom_call.1} parent=1 // pred_check_branch
      %20 = sbr.rel (0) target = $region21
    $region20: #{tpu_custom_call.1} parent=1 // pred_region
      _
    $region21: #{tpu_custom_call.1} parent=1 // pred_fallthru
      _
    %v21 = vld [vmem:[%s0] sm:$0x7]
    %v22 = vld [vmem:[%s1] sm:$0xff]
    %v23 = vld [vmem:[%s1 + $0x8] sm:$0xff]
    %v24 = vld [vmem:[%s1 + $0x10] sm:$0xff]
    %v25 = vld [vmem:[%s1 + $0x18] sm:$0xff]
    %v26 = vld [vmem:[%s2] sm:$0xff]
    %v27 = vld [vmem:[%s2 + $0x8] sm:$0xff]
    %v28 = vld [vmem:[%s2 + $0x10] sm:$0xff]
    %v29 = vld [vmem:[%s2 + $0x18] sm:$0xff]
    %31 = vset.pattern.permute.xlu0 0
    %32 = vperm.xlu0 %31, %v22
    %v33 = vpop.permute.xlu0 %32
    %36 = vset.pattern.permute.xlu0 0
    %37 = vperm.xlu0 %36, %v23
    %v38 = vpop.permute.xlu0 %37
    %41 = vset.pattern.permute.xlu0 0
    %42 = vperm.xlu0 %41, %v24
    %v43 = vpop.permute.xlu0 %42
    %46 = vset.pattern.permute.xlu0 0
    %47 = vperm.xlu0 %46, %v25
    %v48 = vpop.permute.xlu0 %47
    %v50 = vlaneseq
    %v51 = vshrl.u32 %v50, 7
    %v52 = vsub.s32 0, %v51
    %v53 = vrot.slane %v21, %v52
    %v54 = vmul.f32 %v33, %v53
    %v55 = vmul.f32 %v38, %v53
    %v56 = vmul.f32 %v43, %v53
    %v57 = vmul.f32 %v48, %v53
    %59 = vset.pattern.permute.xlu0 0
    %60 = vperm.xlu0 %59, %v26
    %v61 = vpop.permute.xlu0 %60
    %64 = vset.pattern.permute.xlu0 0
    %65 = vperm.xlu0 %64, %v27
    %v66 = vpop.permute.xlu0 %65
    %69 = vset.pattern.permute.xlu0 0
    %70 = vperm.xlu0 %69, %v28
    %v71 = vpop.permute.xlu0 %70
    %74 = vset.pattern.permute.xlu0 0
    %75 = vperm.xlu0 %74, %v29
    %v76 = vpop.permute.xlu0 %75
    %v78 = vadd.f32 %v61, %v54
    %v79 = vadd.f32 %v66, %v55
    %v80 = vadd.f32 %v71, %v56
    %v81 = vadd.f32 %v76, %v57
    %82 = vset.pattern.permute.xlu0 1
    %83 = vperm.xlu0 %82, %v22
    %v84 = vpop.permute.xlu0 %83
    %86 = vset.pattern.permute.xlu0 1
    %87 = vperm.xlu0 %86, %v23
    %v88 = vpop.permute.xlu0 %87
    %90 = vset.pattern.permute.xlu0 1
    %91 = vperm.xlu0 %90, %v24
    %v92 = vpop.permute.xlu0 %91
    %94 = vset.pattern.permute.xlu0 1
    %95 = vperm.xlu0 %94, %v25
    %v96 = vpop.permute.xlu0 %95
    %v98 = vlaneseq
    %v99 = vshrl.u32 %v98, 7
    %v100 = vsub.s32 1, %v99
    %v101 = vrot.slane %v21, %v100
    %v102 = vmul.f32 %v84, %v101
    %v103 = vmul.f32 %v88, %v101
    %v104 = vmul.f32 %v92, %v101
    %v105 = vmul.f32 %v96, %v101
    %v106 = vadd.f32 %v78, %v102
    %v107 = vadd.f32 %v79, %v103
    %v108 = vadd.f32 %v80, %v104
    %v109 = vadd.f32 %v81, %v105
    %110 = vset.pattern.permute.xlu0 2
    %111 = vperm.xlu0 %110, %v22
    %v112 = vpop.permute.xlu0 %111
    %114 = vset.pattern.permute.xlu0 2
    %115 = vperm.xlu0 %114, %v23
    %v116 = vpop.permute.xlu0 %115
    %118 = vset.pattern.permute.xlu0 2
    %119 = vperm.xlu0 %118, %v24
    %v120 = vpop.permute.xlu0 %119
    %122 = vset.pattern.permute.xlu0 2
    %123 = vperm.xlu0 %122, %v25
    %v124 = vpop.permute.xlu0 %123
    %v126 = vlaneseq
    %v127 = vshrl.u32 %v126, 7
    %v128 = vsub.s32 2, %v127
    %v129 = vrot.slane %v21, %v128
    %v130 = vmul.f32 %v112, %v129
    %v131 = vmul.f32 %v116, %v129
    %v132 = vmul.f32 %v120, %v129
    %v133 = vmul.f32 %v124, %v129
    %v134 = vadd.f32 %v106, %v130
    %v135 = vadd.f32 %v107, %v131
    %v136 = vadd.f32 %v108, %v132
    %v137 = vadd.f32 %v109, %v133
    %v138 = vmax.f32 %v134, 0.0
    %v139 = vmax.f32 %v135, 0.0
    %v140 = vmax.f32 %v136, 0.0
    %v141 = vmax.f32 %v137, 0.0
    %v142 = vld [vmem:[%s3] sm:$0x3]
    %v143 = vld [vmem:[%s4] sm:$0x3]
    %145 = vset.pattern.permute.xlu0 0
    %146 = vperm.xlu0 %145, %v143
    %v147 = vpop.permute.xlu0 %146
    %vm149 = vcmask 261120
    %v151 = vsel %vm149, %v142, 0
    %153 = vmatprep.subr.mxu0 0.0
    %154 = vmatpush1.msra.mxu0 %v138
    %155 = vmatprep.subr.mxu0 0.0
    %156 = vmatpush1.msra.mxu0 %v139
    %157 = vmatprep.subr.mxu0 0.0
    %158 = vmatpush1.msra.mxu0 %v140
    %159 = vmatprep.subr.mxu0 0.0
    %160 = vmatpush1.msra.mxu0 %v141
    %161 = vmatprep.subr.mxu0 0.0
    %162 = vmatpush1.msra.mxu0 0.0
    %163 = vmatprep.subr.mxu0 0.0
    %164 = vmatpush1.msra.mxu0 0.0
    %165 = vmatprep.subr.mxu0 0.0
    %166 = vmatpush1.msra.mxu0 0.0
    %167 = vmatprep.subr.mxu0 0.0
    %168 = vmatpush1.msra.mxu0 0.0
    %169 = vmatprep.subr.mxu0 0.0
    %170 = vmatpush1.msra.mxu0 0.0
    %171 = vmatprep.subr.mxu0 0.0
    %172 = vmatpush1.msra.mxu0 0.0
    %173 = vmatprep.subr.mxu0 0.0
    %174 = vmatpush1.msra.mxu0 0.0
    %175 = vmatprep.subr.mxu0 0.0
    %176 = vmatpush1.msra.mxu0 0.0
    %177 = vmatprep.subr.mxu0 0.0
    %178 = vmatpush1.msra.mxu0 0.0
    %179 = vmatprep.subr.mxu0 0.0
    %180 = vmatpush1.msra.mxu0 0.0
    %181 = vmatprep.subr.mxu0 0.0
    %182 = vmatpush1.msra.mxu0 0.0
    %183 = vmatprep.subr.mxu0 0.0
    %184 = vmatpush1.msra.mxu0 0.0
    %185 = vmatprep.subr.mxu0 0.0
    %186 = vmatpush1.msra.mxu0 0.0
    %187 = vmatprep.subr.mxu0 0.0
    %188 = vmatpush1.msra.mxu0 0.0
    %189 = vmatprep.subr.mxu0 0.0
    %190 = vmatpush1.msra.mxu0 0.0
    %191 = vmatprep.subr.mxu0 0.0
    %192 = vmatpush1.msra.mxu0 0.0
    %193 = vmatprep.subr.mxu0 0.0
    %194 = vmatpush1.msra.mxu0 0.0
    %195 = vmatprep.subr.mxu0 0.0
    %196 = vmatpush1.msra.mxu0 0.0
    %197 = vmatprep.subr.mxu0 0.0
    %198 = vmatpush1.msra.mxu0 0.0
    %199 = vmatprep.subr.mxu0 0.0
    %200 = vmatpush1.msra.mxu0 0.0
    %201 = vmatprep.subr.mxu0 0.0
    %202 = vmatpush1.msra.mxu0 0.0
    %203 = vmatprep.subr.mxu0 0.0
    %204 = vmatpush1.msra.mxu0 0.0
    %205 = vmatprep.subr.mxu0 0.0
    %206 = vmatpush1.msra.mxu0 0.0
    %207 = vmatprep.subr.mxu0 0.0
    %208 = vmatpush1.msra.mxu0 0.0
    %209 = vmatprep.subr.mxu0 0.0
    %210 = vmatpush1.msra.mxu0 0.0
    %211 = vmatprep.subr.mxu0 0.0
    %212 = vmatpush1.msra.mxu0 0.0
    %213 = vmatprep.subr.mxu0 0.0
    %214 = vmatpush1.msra.mxu0 0.0
    %215 = vmatprep.subr.mxu0 0.0
    %216 = vmatpush1.msra.mxu0 0.0
    %217 = vmatprep.mubr.f32.mxu0 0.0
    %218 = vmatmul.mubr.f32.gmra.mrb[0].mxu0 %v151
    %v219 = vpop.f32.mrb[0].mxu0
    %v220 = vadd.f32 %v147, %v219
    %v221 = vpop.f32.mrb[0].mxu0
    %222 = vdwg.mxu0
    %v223 = vmax.f32 %v220, 0.0
    %224 = vst [vmem:[#allocation2] sm:$0x3] %v223
    // Predicated region
    $region22: #{tpu_custom_call.1} parent=1 // pred_check
      _
    $region23: #{tpu_custom_call.1} parent=1 // pred_check_branch
      %226 = sbr.rel (0) target = $region25
    $region24: #{tpu_custom_call.1} parent=1 // pred_region
      %s228 = ssub.s32 32, 32
      %229 = vsyncadd [#allocation3], %s228
      %s231 = sshll.u32 [#allocation2], 4
      %s232 = int_to_ptr.vmem [resolvable:$true] %s231
      %234 = dma.vmem_to_hbm [thread:$0]  %s232, 32, %s5, [#allocation3]
    $region25: #{tpu_custom_call.1} parent=1 // pred_fallthru
      _
    // Predicated region
    $region26: #{tpu_custom_call.1} parent=1 // pred_check
      _
    $region27: #{tpu_custom_call.1} parent=1 // pred_check_branch
      %236 = sbr.rel (0) target = $region29
    $region28: #{tpu_custom_call.1} parent=1 // pred_region
      %237 = dma.done [#allocation3], 32
    $region29: #{tpu_custom_call.1} parent=1 // pred_fallthru
      _
    %238 = vsyncpa [#allocation3], 1

</llo_original>
